<compile_context>
chip_gen: v7x
topology: tpu7x:2x2x1
jax: 0.10.0
libtpu: 0.0.40
codegen_flags: <defaults>
</compile_context>

<pallas_src>
import functools

import jax
import jax.numpy as jnp
from jax.experimental import pallas as pl
from jax.experimental.pallas import tpu as pltpu


LANE = 128       # lane width: hidden dim padded to a multiple of this
SUBLANE = 8      # sublane width: batch tiles must be multiples of this
MAX_TB = 8192    # cap rows per grid step (keeps (tb,128) f32 hidden temp ~4 MiB)
SPLIT_B = 1024   # above this batch, use >=2 (even) tiles so both v7x TCs work


def _round_up(n, m):
    return ((n + m - 1) // m) * m


def _cdiv(a, b):
    return -(-a // b)


def _choose_batch_tile(B):
    """Pick (tile_rows, num_tiles): as few grid steps as possible; an even tile
    count for large batches so the 'parallel' axis shards across v7x's 2 TCs."""
    n_tiles = max(1, _cdiv(B, MAX_TB))
    if B > SPLIT_B:
        n_tiles = max(2, n_tiles)
        if n_tiles % 2:
            n_tiles += 1
    tb = _round_up(_cdiv(B, n_tiles), SUBLANE)
    n_tiles = _cdiv(B, tb)
    if B > SPLIT_B and n_tiles % 2:
        n_tiles += 1
    return tb, n_tiles


def simplenet_kernel(n_out, x_ref, w1_ref, b1_ref, w2_ref, b2_ref, o_ref):
    # fc1: [tb, D_in] @ [D_in, H_pad] (bf16 in, f32 MXU accumulate) + bias, ReLU.
    h = jnp.dot(x_ref[...], w1_ref[...], preferred_element_type=jnp.float32)
    h = jnp.maximum(h + b1_ref[...], 0.0)
    # fc2: [tb, H_pad] @ [H_pad, N_pad] lane-dense MXU op, f32 accumulate.
    y = jnp.dot(h.astype(w2_ref.dtype), w2_ref[...],
                preferred_element_type=jnp.float32)
    # Store only the real output columns -> narrow (tb, n_out) HBM writeback.
    o_ref[...] = (y[:, :n_out] + b2_ref[...]).astype(o_ref.dtype)


def prepare_params(w1, b1, w2, b2, *, compute_dtype=jnp.bfloat16):
    """Pad/cast parameters once, outside the per-call path.

    w1: [D_in, H]; b1: [1, H]; w2: [H, N]; b2: [1, N].
    Zero padding of the hidden/output dims is mathematically inert
    (zero weights, ReLU(0)=0) and only the first N output columns are stored.
    """
    H = w1.shape[1]
    N = w2.shape[1]
    H_pad = _round_up(H, LANE)
    N_pad = _round_up(N, LANE)
    w1p = jnp.pad(w1, ((0, 0), (0, H_pad - H))).astype(compute_dtype)
    b1p = jnp.pad(b1, ((0, 0), (0, H_pad - H))).astype(jnp.float32)
    w2p = jnp.pad(w2, ((0, H_pad - H), (0, N_pad - N))).astype(compute_dtype)
    b2f = b2.astype(jnp.float32)   # kept unpadded: only the N real cols stored
    return w1p, b1p, w2p, b2f


@functools.partial(jax.jit, static_argnames=("tb", "n_tiles", "compute_dtype"))
def _forward_impl(x, w1p, b1p, w2p, b2, *, tb, n_tiles, compute_dtype):
    B, D_in = x.shape
    H_pad = w1p.shape[1]
    N_pad = w2p.shape[1]
    N = b2.shape[1]
    B_pad = tb * n_tiles

    xp = x.astype(compute_dtype)
    if B_pad != B:
        xp = jnp.pad(xp, ((0, B_pad - B), (0, 0)))

    out = pl.pallas_call(
        functools.partial(simplenet_kernel, N),
        out_shape=jax.ShapeDtypeStruct((B_pad, N), jnp.float32),
        grid=(n_tiles,),
        in_specs=[
            # streamed: one batch tile of x per grid step
            pl.BlockSpec((tb, D_in), lambda i: (i, 0)),
            # VMEM-resident parameters (constant block index across steps)
            pl.BlockSpec((D_in, H_pad), lambda i: (0, 0)),
            pl.BlockSpec((1, H_pad), lambda i: (0, 0)),
            pl.BlockSpec((H_pad, N_pad), lambda i: (0, 0)),
            pl.BlockSpec((1, N), lambda i: (0, 0)),
        ],
        # Narrow output: block last-dim == full array dim (N), so no 128-lane
        # padded slab ever hits HBM.
        out_specs=pl.BlockSpec((tb, N), lambda i: (i, 0)),
        compiler_params=pltpu.CompilerParams(
            dimension_semantics=("parallel",),
        ),
    )(xp, w1p, b1p, w2p, b2)

    return out if B_pad == B else out[:B]


def simplenet_forward(x, params, *, compute_dtype=jnp.bfloat16):
    """x: [B, D_in]; params: output of prepare_params."""
    tb, n_tiles = _choose_batch_tile(x.shape[0])
    w1p, b1p, w2p, b2 = params
    return _forward_impl(x, w1p, b1p, w2p, b2,
                         tb=tb, n_tiles=n_tiles, compute_dtype=compute_dtype)


def init_params(key, input_dim=4, hidden_dim=16, output_dim=3):
    # Deterministic init mimicking nn.Linear's uniform(-1/sqrt(fan_in), +1/sqrt(fan_in)).
    k1, k2, k3, k4 = jax.random.split(key, 4)
    bound1 = 1.0 / jnp.sqrt(input_dim)
    bound2 = 1.0 / jnp.sqrt(hidden_dim)
    w1 = jax.random.uniform(k1, (input_dim, hidden_dim), jnp.float32, -bound1, bound1)
    b1 = jax.random.uniform(k2, (1, hidden_dim), jnp.float32, -bound1, bound1)
    w2 = jax.random.uniform(k3, (hidden_dim, output_dim), jnp.float32, -bound2, bound2)
    b2 = jax.random.uniform(k4, (1, output_dim), jnp.float32, -bound2, bound2)
    return w1, b1, w2, b2


if __name__ == "__main__":
    key = jax.random.PRNGKey(0)
    kx, kp, kx2, kx3 = jax.random.split(key, 4)

    batch, input_dim, hidden_dim, output_dim = 8, 4, 16, 3
    x = jax.random.normal(kx, (batch, input_dim), jnp.float32)
    w1, b1, w2, b2 = init_params(kp, input_dim, hidden_dim, output_dim)
    params = prepare_params(w1, b1, w2, b2)

    # Small batch: single grid step, batch divides tile -> no x padding copy.
    out = simplenet_forward(x, params)
    jax.block_until_ready(out)
    ref = jnp.maximum(x @ w1 + b1, 0.0) @ w2 + b2
    assert out.shape == (batch, output_dim)
    assert jnp.allclose(out, ref, atol=5e-2, rtol=5e-2)   # bf16 matmul inputs

    # Larger batch: 2-tile "parallel" grid (both v7x TCs), narrow (B,3) writeback.
    big_batch = 4096
    xb = jax.random.normal(kx2, (big_batch, input_dim), jnp.float32)
    out_big = simplenet_forward(xb, params)
    jax.block_until_ready(out_big)
    ref_big = jnp.maximum(xb @ w1 + b1, 0.0) @ w2 + b2
    assert out_big.shape == (big_batch, output_dim)
    assert jnp.allclose(out_big, ref_big, atol=5e-2, rtol=5e-2)

    # Ragged batch: exercises the batch pad + slice path.
    odd_batch = 50
    xo = jax.random.normal(kx3, (odd_batch, input_dim), jnp.float32)
    out_odd = simplenet_forward(xo, params)
    jax.block_until_ready(out_odd)
    ref_odd = jnp.maximum(xo @ w1 + b1, 0.0) @ w2 + b2
    assert out_odd.shape == (odd_batch, output_dim)
    assert jnp.allclose(out_odd, ref_odd, atol=5e-2, rtol=5e-2)

    print("KERNEL_OK")
</pallas_src>

<mosaic_0001>
module attributes {stable_mosaic.version = 11 : i64} {
  func.func @simplenet_kernel(%arg0: i32, %arg1: memref<8x4xbf16, #tpu.memory_space<vmem>>, %arg2: memref<4x128xbf16, #tpu.memory_space<vmem>>, %arg3: memref<1x128xf32, #tpu.memory_space<vmem>>, %arg4: memref<128x128xbf16, #tpu.memory_space<vmem>>, %arg5: memref<1x3xf32, #tpu.memory_space<vmem>>, %arg6: memref<8x3xf32, #tpu.memory_space<vmem>>) attributes {dimension_semantics = [#tpu.dimension_semantics<parallel>], iteration_bounds = array<i64: 1>, scalar_prefetch = 0 : i64, scratch_operands = 0 : i64, tpu.core_type = #tpu.core_type<tc>, window_params = [{transform_indices = @transform_0, window_bounds = array<i64: 8, 4>}, {pipeline_mode = #tpu.pipeline_mode<synchronous>, transform_indices = @transform_1, window_bounds = array<i64: 4, 128>}, {pipeline_mode = #tpu.pipeline_mode<synchronous>, transform_indices = @transform_2, window_bounds = array<i64: 1, 128>}, {pipeline_mode = #tpu.pipeline_mode<synchronous>, transform_indices = @transform_3, window_bounds = array<i64: 128, 128>}, {pipeline_mode = #tpu.pipeline_mode<synchronous>, transform_indices = @transform_4, window_bounds = array<i64: 1, 3>}, {transform_indices = @transform_5, window_bounds = array<i64: 8, 3>}]} {
    %c0 = arith.constant 0 : index
    %c0_0 = arith.constant 0 : index
    %0 = vector.load %arg1[%c0, %c0_0] : memref<8x4xbf16, #tpu.memory_space<vmem>>, vector<8x4xbf16>
    %c0_1 = arith.constant 0 : index
    %c0_2 = arith.constant 0 : index
    %1 = vector.load %arg2[%c0_1, %c0_2] : memref<4x128xbf16, #tpu.memory_space<vmem>>, vector<4x128xbf16>
    %cst = arith.constant dense<0.000000e+00> : vector<8x128xf32>
    %2 = tpu.matmul %0, %1, %cst {dimension_numbers = #tpu.dot_dimension_numbers<[1], [0], [0], [1], [0, 0, 1, 1], [], []>} : vector<8x4xbf16>, vector<4x128xbf16>, vector<8x128xf32> -> vector<8x128xf32>
    %c0_3 = arith.constant 0 : index
    %c0_4 = arith.constant 0 : index
    %3 = vector.load %arg3[%c0_3, %c0_4] : memref<1x128xf32, #tpu.memory_space<vmem>>, vector<1x128xf32>
    %4 = vector.broadcast %3 : vector<1x128xf32> to vector<8x128xf32>
    %5 = arith.addf %2, %4 : vector<8x128xf32>
    %cst_5 = arith.constant 0.000000e+00 : f32
    %6 = vector.broadcast %cst_5 : f32 to vector<8x128xf32>
    %7 = arith.maximumf %5, %6 : vector<8x128xf32>
    %8 = arith.truncf %7 : vector<8x128xf32> to vector<8x128xbf16>
    %c0_6 = arith.constant 0 : index
    %c0_7 = arith.constant 0 : index
    %9 = vector.load %arg4[%c0_6, %c0_7] : memref<128x128xbf16, #tpu.memory_space<vmem>>, vector<128x128xbf16>
    %cst_8 = arith.constant dense<0.000000e+00> : vector<8x128xf32>
    %10 = tpu.matmul %8, %9, %cst_8 {dimension_numbers = #tpu.dot_dimension_numbers<[1], [0], [0], [1], [0, 0, 1, 1], [], []>} : vector<8x128xbf16>, vector<128x128xbf16>, vector<8x128xf32> -> vector<8x128xf32>
    %11 = vector.extract_strided_slice %10 {offsets = [0, 0], sizes = [8, 3], strides = [1, 1]} : vector<8x128xf32> to vector<8x3xf32>
    %c0_9 = arith.constant 0 : index
    %c0_10 = arith.constant 0 : index
    %12 = vector.load %arg5[%c0_9, %c0_10] : memref<1x3xf32, #tpu.memory_space<vmem>>, vector<1x3xf32>
    %13 = vector.broadcast %12 : vector<1x3xf32> to vector<8x3xf32>
    %14 = arith.addf %11, %13 : vector<8x3xf32>
    %c0_11 = arith.constant 0 : index
    %c0_12 = arith.constant 0 : index
    %15 = vector.load %arg6[%c0_11, %c0_12] : memref<8x3xf32, #tpu.memory_space<vmem>>, vector<8x3xf32>
    tpu.vector_store %arg6[%c0_11, %c0_12], %14 {strides = array<i32>} : memref<8x3xf32, #tpu.memory_space<vmem>>, vector<8x3xf32>,
    return
  }
  func.func @transform_0(%arg0: i32) -> (i32, i32) {
    %c0_i32 = arith.constant 0 : i32
    %c0_i32_0 = arith.constant 0 : i32
    return %arg0, %c0_i32 : i32, i32
  }
  func.func @transform_1(%arg0: i32) -> (i32, i32) {
    %c0_i32 = arith.constant 0 : i32
    %c0_i32_0 = arith.constant 0 : i32
    %c0_i32_1 = arith.constant 0 : i32
    return %c0_i32, %c0_i32_0 : i32, i32
  }
  func.func @transform_2(%arg0: i32) -> (i32, i32) {
    %c0_i32 = arith.constant 0 : i32
    %c0_i32_0 = arith.constant 0 : i32
    %c0_i32_1 = arith.constant 0 : i32
    return %c0_i32, %c0_i32_0 : i32, i32
  }
  func.func @transform_3(%arg0: i32) -> (i32, i32) {
    %c0_i32 = arith.constant 0 : i32
    %c0_i32_0 = arith.constant 0 : i32
    %c0_i32_1 = arith.constant 0 : i32
    return %c0_i32, %c0_i32_0 : i32, i32
  }
  func.func @transform_4(%arg0: i32) -> (i32, i32) {
    %c0_i32 = arith.constant 0 : i32
    %c0_i32_0 = arith.constant 0 : i32
    %c0_i32_1 = arith.constant 0 : i32
    return %c0_i32, %c0_i32_0 : i32, i32
  }
  func.func @transform_5(%arg0: i32) -> (i32, i32) {
    %c0_i32 = arith.constant 0 : i32
    %c0_i32_0 = arith.constant 0 : i32
    return %arg0, %c0_i32 : i32, i32
  }
}

</mosaic_0001>

<llo_original>
// kernel: _forward_impl.1
$region0: #{_forward_impl.1}
  #allocation0 [shape = 'u32[]', space=smem, size = 0x4, offset = 0x4, fixed_abs, tag = 'smem constant byte address 0x4 - core index']
  #allocation1 [shape = 'u32[144,128]{1,0:T(1,128)}', space=vmem, size = 0x12000, scoped, tag = 'internal scratch']
  %s0 = inlined_call_operand.vmem [shape: bf16[8,4], index: 0, kind: input, shape index: {}]
  %s1 = inlined_call_operand.vmem [shape: bf16[4,128], index: 1, kind: input, shape index: {}]
  %s2 = inlined_call_operand.vmem [shape: f32[1,128], index: 2, kind: input, shape index: {}]
  %s3 = inlined_call_operand.hbm [shape: bf16[128,128], index: 3, kind: input, shape index: {}]
  %s4 = inlined_call_operand.vmem [shape: f32[1,3], index: 4, kind: input, shape index: {}]
  %s5 = inlined_call_operand.vmem [shape: f32[8,3], index: 5, kind: output, shape index: {}]
  %s6 = sld [smem:[#allocation0]]
  $region34: #{_forward_impl.1} parent=0
    _
  %s8 = ssub.s32 1, %s6
  %s9 = scalar_select 0, %s8, %s6
  $region1: #{_forward_impl.1} parent=0
    #allocation2 [shape = 'u8[32768]{0}', space=vmem, size = 0x8000, scoped, tag = 'input window, operand 3, single buffered']
    #allocation3 [shape = 's32[1]{0}', space=sflag, size = 0x4, scoped, tag = 'scoped memory for _forward_impl.1']
    %10 = vsyncpa [#allocation3], 0
    // Predicated region
    $region2: #{_forward_impl.1} parent=1 // pred_check
      _
    $region3: #{_forward_impl.1} parent=1 // pred_check_branch
      %12 = sbr.rel (0) target = $region5
    $region4: #{_forward_impl.1} parent=1 // pred_region
      _
    $region5: #{_forward_impl.1} parent=1 // pred_fallthru
      _
    // Predicated region
    $region6: #{_forward_impl.1} parent=1 // pred_check
      _
    $region7: #{_forward_impl.1} parent=1 // pred_check_branch
      %14 = sbr.rel (0) target = $region9
    $region8: #{_forward_impl.1} parent=1 // pred_region
      _
    $region9: #{_forward_impl.1} parent=1 // pred_fallthru
      _
    // Predicated region
    $region10: #{_forward_impl.1} parent=1 // pred_check
      _
    $region11: #{_forward_impl.1} parent=1 // pred_check_branch
      %16 = sbr.rel (0) target = $region13
    $region12: #{_forward_impl.1} parent=1 // pred_region
      _
    $region13: #{_forward_impl.1} parent=1 // pred_fallthru
      _
    // Predicated region
    $region14: #{_forward_impl.1} parent=1 // pred_check
      _
    $region15: #{_forward_impl.1} parent=1 // pred_check_branch
      %18 = sbr.rel (0) target = $region17
    $region16: #{_forward_impl.1} parent=1 // pred_region
      %s20 = ssub.s32 1024, 1024
      %21 = vsyncadd [#allocation3], %s20
      %s22 = sshll.u32 [#allocation2], 4
      %s23 = int_to_ptr.vmem [resolvable:$true] %s22
      %28 = dma.hbm_to_vmem [thread:$0]  %s3, 1024, %s23, [#allocation3], 64, 64, 4
    $region17: #{_forward_impl.1} parent=1 // pred_fallthru
      _
    // Predicated region
    $region18: #{_forward_impl.1} parent=1 // pred_check
      _
    $region19: #{_forward_impl.1} parent=1 // pred_check_branch
      %30 = sbr.rel (0) target = $region21
    $region20: #{_forward_impl.1} parent=1 // pred_region
      _
    $region21: #{_forward_impl.1} parent=1 // pred_fallthru
      _
    // Predicated region
    $region22: #{_forward_impl.1} parent=1 // pred_check
      _
    $region23: #{_forward_impl.1} parent=1 // pred_check_branch
      %32 = sbr.rel (0) target = $region25
    $region24: #{_forward_impl.1} parent=1 // pred_region
      %33 = dma.done [#allocation3], 1024
    $region25: #{_forward_impl.1} parent=1 // pred_fallthru
      _
    %v35 = vld [vmem:[%s0] sm:$0xf]
    %v36 = vld [vmem:[%s1] sm:$0x3]
    %v37 = vld [vmem:[%s2] sm:$0x1]
    %v39 = vlaneseq
    %v40 = vshrl.u32 %v39, 7
    %v41 = vsub.s32 0, %v40
    %v42 = vrot.slane %v37, %v41
    %vm44 = vcmask 31744
    %v46 = vsel %vm44, %v35, 0
    %vm48 = vcmask 1041408
    %v50 = vsel %vm48, %v36, 0
    %52 = vmatprep.subr.bf16.mxu0 0
    %53 = vmatpush1.bf16.msra.mxu0 %v50
    %54 = vmatprep.subr.bf16.mxu0 0
    %55 = vmatpush1.bf16.msra.mxu0 0
    %56 = vmatprep.subr.bf16.mxu0 0
    %57 = vmatpush1.bf16.msra.mxu0 0
    %58 = vmatprep.subr.bf16.mxu0 0
    %59 = vmatpush1.bf16.msra.mxu0 0
    %60 = vmatprep.subr.bf16.mxu0 0
    %61 = vmatpush1.bf16.msra.mxu0 0
    %62 = vmatprep.subr.bf16.mxu0 0
    %63 = vmatpush1.bf16.msra.mxu0 0
    %64 = vmatprep.subr.bf16.mxu0 0
    %65 = vmatpush1.bf16.msra.mxu0 0
    %66 = vmatprep.subr.bf16.mxu0 0
    %67 = vmatpush1.bf16.msra.mxu0 0
    %68 = vmatprep.subr.bf16.mxu0 0
    %69 = vmatpush1.bf16.msra.mxu0 0
    %70 = vmatprep.subr.bf16.mxu0 0
    %71 = vmatpush1.bf16.msra.mxu0 0
    %72 = vmatprep.subr.bf16.mxu0 0
    %73 = vmatpush1.bf16.msra.mxu0 0
    %74 = vmatprep.subr.bf16.mxu0 0
    %75 = vmatpush1.bf16.msra.mxu0 0
    %76 = vmatprep.subr.bf16.mxu0 0
    %77 = vmatpush1.bf16.msra.mxu0 0
    %78 = vmatprep.subr.bf16.mxu0 0
    %79 = vmatpush1.bf16.msra.mxu0 0
    %80 = vmatprep.subr.bf16.mxu0 0
    %81 = vmatpush1.bf16.msra.mxu0 0
    %82 = vmatprep.subr.bf16.mxu0 0
    %83 = vmatpush1.bf16.msra.mxu0 0
    %84 = vmatprep.mubr.bf16.mxu0 0
    %85 = vmatmul.mubr.bf16.gmra.mrb[0].mxu0 %v46
    %v86 = vpop.f32.mrb[0].mxu0
    %v87 = vadd.f32 %v42, %v86
    %v88 = vpop.f32.mrb[0].mxu0
    %v89 = vpop.f32.mrb[0].mxu0
    %v90 = vpop.f32.mrb[0].mxu0
    %91 = vdwg.mxu0
    %v92 = vmax.f32 %v87, 0.0
    %v93 = vpack.c.bf16 %v92, %v92
    %v94 = vld [vmem:[#allocation2] sm:$0xf]
    %v95 = vld [vmem:[#allocation2 + $0x4] sm:$0xf]
    %v96 = vld [vmem:[#allocation2 + $0x8] sm:$0xf]
    %v97 = vld [vmem:[#allocation2 + $0xc] sm:$0xf]
    %v98 = vld [vmem:[#allocation2 + $0x10] sm:$0xf]
    %v99 = vld [vmem:[#allocation2 + $0x14] sm:$0xf]
    %v100 = vld [vmem:[#allocation2 + $0x18] sm:$0xf]
    %v101 = vld [vmem:[#allocation2 + $0x1c] sm:$0xf]
    %v102 = vld [vmem:[#allocation2 + $0x20] sm:$0xf]
    %v103 = vld [vmem:[#allocation2 + $0x24] sm:$0xf]
    %v104 = vld [vmem:[#allocation2 + $0x28] sm:$0xf]
    %v105 = vld [vmem:[#allocation2 + $0x2c] sm:$0xf]
    %v106 = vld [vmem:[#allocation2 + $0x30] sm:$0xf]
    %v107 = vld [vmem:[#allocation2 + $0x34] sm:$0xf]
    %v108 = vld [vmem:[#allocation2 + $0x38] sm:$0xf]
    %v109 = vld [vmem:[#allocation2 + $0x3c] sm:$0xf]
    %v126 = vunpack.c.l.b16 %v94
    %v127 = vunpack.c.l.b16 %v95
    %v128 = vunpack.c.l.b16 %v96
    %v129 = vunpack.c.l.b16 %v97
    %v130 = vunpack.c.l.b16 %v98
    %v131 = vunpack.c.l.b16 %v99
    %v132 = vunpack.c.l.b16 %v100
    %v133 = vunpack.c.l.b16 %v101
    %v134 = vunpack.c.l.b16 %v102
    %v135 = vunpack.c.l.b16 %v103
    %v136 = vunpack.c.l.b16 %v104
    %v137 = vunpack.c.l.b16 %v105
    %v138 = vunpack.c.l.b16 %v106
    %v139 = vunpack.c.l.b16 %v107
    %v140 = vunpack.c.l.b16 %v108
    %v141 = vunpack.c.l.b16 %v109
    %v142 = vpack.c.b16 %v127, %v126
    %v143 = vpack.c.b16 %v129, %v128
    %v144 = vpack.c.b16 %v131, %v130
    %v145 = vpack.c.b16 %v133, %v132
    %v146 = vpack.c.b16 %v135, %v134
    %v147 = vpack.c.b16 %v137, %v136
    %v148 = vpack.c.b16 %v139, %v138
    %v149 = vpack.c.b16 %v141, %v140
    %158 = vmatprep.subr.bf16.mxu0 0
    %159 = vmatpush1.bf16.msra.mxu0 %v142
    %160 = vmatprep.subr.bf16.mxu0 0
    %161 = vmatpush1.bf16.msra.mxu0 %v143
    %162 = vmatprep.subr.bf16.mxu0 0
    %163 = vmatpush1.bf16.msra.mxu0 %v144
    %164 = vmatprep.subr.bf16.mxu0 0
    %165 = vmatpush1.bf16.msra.mxu0 %v145
    %166 = vmatprep.subr.bf16.mxu0 0
    %167 = vmatpush1.bf16.msra.mxu0 %v146
    %168 = vmatprep.subr.bf16.mxu0 0
    %169 = vmatpush1.bf16.msra.mxu0 %v147
    %170 = vmatprep.subr.bf16.mxu0 0
    %171 = vmatpush1.bf16.msra.mxu0 %v148
    %172 = vmatprep.subr.bf16.mxu0 0
    %173 = vmatpush1.bf16.msra.mxu0 %v149
    %174 = vmatprep.subr.bf16.mxu0 0
    %175 = vmatpush1.bf16.msra.mxu0 0
    %176 = vmatprep.subr.bf16.mxu0 0
    %177 = vmatpush1.bf16.msra.mxu0 0
    %178 = vmatprep.subr.bf16.mxu0 0
    %179 = vmatpush1.bf16.msra.mxu0 0
    %180 = vmatprep.subr.bf16.mxu0 0
    %181 = vmatpush1.bf16.msra.mxu0 0
    %182 = vmatprep.subr.bf16.mxu0 0
    %183 = vmatpush1.bf16.msra.mxu0 0
    %184 = vmatprep.subr.bf16.mxu0 0
    %185 = vmatpush1.bf16.msra.mxu0 0
    %186 = vmatprep.subr.bf16.mxu0 0
    %187 = vmatpush1.bf16.msra.mxu0 0
    %188 = vmatprep.subr.bf16.mxu0 0
    %189 = vmatpush1.bf16.msra.mxu0 0
    %190 = vmatprep.mubr.bf16.mxu0 0
    %191 = vmatmul.mubr.bf16.gmra.mrb[0].mxu0 %v93
    %v192 = vpop.f32.mrb[0].mxu0
    %v193 = vadd.f32 0.0, %v192
    %v194 = vpop.f32.mrb[0].mxu0
    %v195 = vpop.f32.mrb[0].mxu0
    %v196 = vpop.f32.mrb[0].mxu0
    %197 = vdwg.mxu0
    %v198 = vld [vmem:[%s4] sm:$0x1]
    %v200 = vlaneseq
    %v201 = vshrl.u32 %v200, 7
    %v202 = vsub.s32 0, %v201
    %v203 = vrot.slane %v198, %v202
    %v205 = vadd.f32 %v193, %v203
    %vm206 = vcmask 23552
    %207 = vst.msk [vmem:[%s5] sm:$0xff] %vm206, %v205
    // Predicated region
    $region26: #{_forward_impl.1} parent=1 // pred_check
      _
    $region27: #{_forward_impl.1} parent=1 // pred_check_branch
      %209 = sbr.rel (0) target = $region29
    $region28: #{_forward_impl.1} parent=1 // pred_region
      _
    $region29: #{_forward_impl.1} parent=1 // pred_fallthru
      _
    // Predicated region
    $region30: #{_forward_impl.1} parent=1 // pred_check
      _
    $region31: #{_forward_impl.1} parent=1 // pred_check_branch
      %211 = sbr.rel (0) target = $region33
    $region32: #{_forward_impl.1} parent=1 // pred_region
      _
    $region33: #{_forward_impl.1} parent=1 // pred_fallthru
      _
    %212 = vsyncpa [#allocation3], 1

</llo_original>
